<compile_context>
chip_gen: v5e
topology: v5e:2x2
jax: 0.10.0
libtpu: 0.0.40
codegen_flags: <defaults>
</compile_context>

<pallas_src>
import jax
import jax.numpy as jnp
import numpy as np
from jax.experimental import pallas as pl
from jax.experimental.pallas import tpu as pltpu

_LANE = 128
_MAX_COLS = 128 * 8            # widen the slab up to 1024 lanes: fewer, larger DMAs
_TILE_BYTES_BUDGET = 2 << 20   # 2 MiB per tile; in+out double-buffered = 8 MiB VMEM,
                               # safely under every generation's default scoped VMEM
                               # (v5e 16 MiB, v6e/v7x 32 MiB) while sitting well into
                               # the ~85%+ HBM-copy-roofline plateau.


def _identity_copy_kernel(y_ref, o_ref):
    # Forward of ParamGrad_AF returns y unchanged: pure pass-through.
    o_ref[...] = y_ref[...]


def _choose_layout(total: int, itemsize: int):
    """Pick a lane-dense 2-D slab (rows, cols) and a VMEM-budgeted tile_rows."""
    # Widen the lane dimension as far as divisibility allows (full-width
    # unmasked vector stores, fewer grid steps).
    cols = _LANE
    while cols * 2 <= _MAX_COLS and total % (cols * 2) == 0:
        cols *= 2
    rows = total // cols

    # Sublane packing: tile rows in multiples of 8 for 32-bit dtypes,
    # 16 for 16-bit, 32 for 8-bit, so packed-sublane vregs stay aligned.
    packing = max(1, 4 // max(1, itemsize))
    sublane = 8 * packing

    # Largest tile (multiple of `sublane`) that fits the per-tile VMEM budget.
    max_rows = max(sublane,
                   (_TILE_BYTES_BUDGET // (cols * itemsize)) // sublane * sublane)
    if rows <= max_rows:
        tile_rows = rows       # whole slab as one block (full-dim block is legal)
    else:
        tile_rows = max_rows   # cdiv grid below masks the partial last block
    return rows, cols, tile_rows


def _pallas_identity_2d(y2d: jax.Array, tile_rows: int) -> jax.Array:
    rows, cols = y2d.shape
    grid = (pl.cdiv(rows, tile_rows),)
    return pl.pallas_call(
        _identity_copy_kernel,
        out_shape=jax.ShapeDtypeStruct((rows, cols), y2d.dtype),
        grid_spec=pltpu.PrefetchScalarGridSpec(
            num_scalar_prefetch=0,
            grid=grid,
            in_specs=[pl.BlockSpec((tile_rows, cols), lambda i: (i, 0))],
            out_specs=pl.BlockSpec((tile_rows, cols), lambda i: (i, 0)),
        ),
        # Output aliases the input HBM buffer: with caller-side donation this
        # becomes an in-place pass-through (no fresh output allocation).
        input_output_aliases={0: 0},
        cost_estimate=pl.CostEstimate(
            flops=0,
            transcendentals=0,
            bytes_accessed=2 * rows * cols * y2d.dtype.itemsize,
        ),
        compiler_params=pltpu.CompilerParams(
            # Lets v7x shard the copy grid across its 2 TensorCores; no-op elsewhere.
            dimension_semantics=("parallel",),
        ),
    )(y2d)


class ParamLossPallas:
    """JAX/Pallas equivalent of ParamLoss's forward pass."""

    def __init__(self, gamma: float, eta: float):
        self.gamma = gamma
        self.eta = eta

    def __call__(self, param: jax.Array, y: jax.Array, ymask: jax.Array) -> jax.Array:
        # Forward ignores param / ymask / gamma / eta; it is the identity on y.
        del param, ymask
        total = int(y.size)
        itemsize = y.dtype.itemsize
        if total == 0 or total % _LANE != 0:
            # Ragged sizes: the forward is exactly the identity, so returning y
            # is both the fastest and the only robust choice (avoids any
            # oversized single-block DMA that could exceed VMEM).
            return y
        rows, cols, tile_rows = _choose_layout(total, itemsize)
        y2d = y.reshape(rows, cols)
        out2d = _pallas_identity_2d(y2d, tile_rows)
        return out2d.reshape(y.shape)


if __name__ == "__main__":
    key = jax.random.PRNGKey(0)
    k_param, k_y, k_mask = jax.random.split(key, 3)

    B, C, H, W = 2, 4, 16, 16

    # Deterministic synthetic inputs (shapes implied by the PyTorch module):
    #   param: one scalar per batch element (its grad in backward is shape [B])
    #   y:     NCHW activation tensor
    #   ymask: NCHW 0/1 mask
    param = jax.random.normal(k_param, (B,), dtype=jnp.float32)
    y = jax.random.normal(k_y, (B, C, H, W), dtype=jnp.float32)
    ymask = (jax.random.uniform(k_mask, (B, C, H, W)) > 0.5).astype(jnp.float32)

    # Snapshot y on host before the (aliased) call for a watertight comparison.
    y_host = np.asarray(y)

    module = ParamLossPallas(gamma=0.1, eta=0.01)
    out = module(param, y, ymask)
    out = jax.block_until_ready(out)

    # Correctness: forward must be exactly identity on y.
    assert out.shape == y.shape and out.dtype == y.dtype
    assert np.array_equal(np.asarray(out), y_host)

    print("KERNEL_OK")
</pallas_src>

<mosaic_0001>
module attributes {stable_mosaic.version = 11 : i64} {
  func.func @_identity_copy_kernel(%arg0: i32, %arg1: memref<2x1024xf32, #tpu.memory_space<vmem>>, %arg2: memref<2x1024xf32, #tpu.memory_space<vmem>>) attributes {dimension_semantics = [#tpu.dimension_semantics<parallel>], iteration_bounds = array<i64: 1>, scalar_prefetch = 0 : i64, scratch_operands = 0 : i64, tpu.core_type = #tpu.core_type<tc>, window_params = [{transform_indices = @transform_0, window_bounds = array<i64: 2, 1024>}, {transform_indices = @transform_1, window_bounds = array<i64: 2, 1024>}]} {
    %c0 = arith.constant 0 : index
    %c0_0 = arith.constant 0 : index
    %0 = vector.load %arg1[%c0, %c0_0] : memref<2x1024xf32, #tpu.memory_space<vmem>>, vector<2x1024xf32>
    %c0_1 = arith.constant 0 : index
    %c0_2 = arith.constant 0 : index
    %1 = vector.load %arg2[%c0_1, %c0_2] : memref<2x1024xf32, #tpu.memory_space<vmem>>, vector<2x1024xf32>
    tpu.vector_store %arg2[%c0_1, %c0_2], %0 {strides = array<i32>} : memref<2x1024xf32, #tpu.memory_space<vmem>>, vector<2x1024xf32>,
    return
  }
  func.func @transform_0(%arg0: i32) -> (i32, i32) {
    %c0_i32 = arith.constant 0 : i32
    %c0_i32_0 = arith.constant 0 : i32
    return %arg0, %c0_i32 : i32, i32
  }
  func.func @transform_1(%arg0: i32) -> (i32, i32) {
    %c0_i32 = arith.constant 0 : i32
    %c0_i32_0 = arith.constant 0 : i32
    return %arg0, %c0_i32 : i32, i32
  }
}

</mosaic_0001>

<llo_original>
// kernel: tpu_custom_call.1
$region0: #{tpu_custom_call.1}
  #allocation0 [shape = 'u32[]', space=smem, size = 0x4, offset = 0x4, fixed_abs, tag = 'smem constant byte address 0x4 - core index']
  #allocation1 [shape = 'u32[72,128]{1,0:T(1,128)}', space=vmem, size = 0x9000, scoped, tag = 'internal scratch']
  %s0 = inlined_call_operand.hbm [shape: f32[2,1024], index: 0, kind: input, shape index: {}, may-alias: {0,1}]
  %s1 = inlined_call_operand.hbm [shape: f32[2,1024], index: 1, kind: output, shape index: {}, may-alias: {0,1}]
  %s2 = sld [smem:[#allocation0]]
  $region18: #{tpu_custom_call.1} parent=0
    _
  %s4 = ssub.s32 1, %s2
  %s5 = scalar_select 0, %s4, %s2
  $region1: #{tpu_custom_call.1} parent=0
    #allocation2 [shape = 'u8[8192]{0}', space=vmem, size = 0x2000, scoped, tag = 'input window, operand 0, single buffered']
    #allocation3 [shape = 's32[1]{0}', space=sflag, size = 0x4, scoped, tag = 'scoped memory for tpu_custom_call.1']
    #allocation4 [shape = 's32[1]{0}', space=sflag, size = 0x4, scoped, tag = 'scoped memory for tpu_custom_call.1']
    #allocation5 [shape = 'u8[8192]{0}', space=vmem, size = 0x2000, scoped, tag = 'output window, operand 0, single buffered']
    %6 = vsyncpa [#allocation3], 0
    %7 = vsyncpa [#allocation4], 0
    // Predicated region
    $region2: #{tpu_custom_call.1} parent=1 // pred_check
      _
    $region3: #{tpu_custom_call.1} parent=1 // pred_check_branch
      %9 = sbr.rel (0) target = $region5
    $region4: #{tpu_custom_call.1} parent=1 // pred_region
      %11 = vsyncadd [#allocation3], 0
      %s13 = sshll.u32 %s0, 4
      %s14 = int_to_ptr.hbm [resolvable:$true] %s13
      %s15 = sshll.u32 [#allocation2], 4
      %s16 = int_to_ptr.vmem [resolvable:$true] %s15
      %18 = dma.hbm_to_vmem [thread:$0]  %s14, 256, %s16, [#allocation3]
    $region5: #{tpu_custom_call.1} parent=1 // pred_fallthru
      _
    // Predicated region
    $region6: #{tpu_custom_call.1} parent=1 // pred_check
      _
    $region7: #{tpu_custom_call.1} parent=1 // pred_check_branch
      %20 = sbr.rel (0) target = $region9
    $region8: #{tpu_custom_call.1} parent=1 // pred_region
      %22 = dma.done [#allocation3], 256
    $region9: #{tpu_custom_call.1} parent=1 // pred_fallthru
      _
    %v23 = vld [vmem:[#allocation2] sm:$0xff]
    %v24 = vld [vmem:[#allocation2 + $0x8] sm:$0xff]
    %25 = vst [vmem:[#allocation5] sm:$0xff] %v23
    %26 = vst [vmem:[#allocation5 + $0x8] sm:$0xff] %v24
    // Predicated region
    $region10: #{tpu_custom_call.1} parent=1 // pred_check
      _
    $region11: #{tpu_custom_call.1} parent=1 // pred_check_branch
      %28 = sbr.rel (0) target = $region13
    $region12: #{tpu_custom_call.1} parent=1 // pred_region
      %30 = vsyncadd [#allocation4], 0
      %s32 = sshll.u32 [#allocation5], 4
      %s33 = int_to_ptr.vmem [resolvable:$true] %s32
      %s34 = sshll.u32 %s1, 4
      %s35 = int_to_ptr.hbm [resolvable:$true] %s34
      %37 = dma.vmem_to_hbm [thread:$0]  %s33, 256, %s35, [#allocation4]
    $region13: #{tpu_custom_call.1} parent=1 // pred_fallthru
      _
    // Predicated region
    $region14: #{tpu_custom_call.1} parent=1 // pred_check
      _
    $region15: #{tpu_custom_call.1} parent=1 // pred_check_branch
      %39 = sbr.rel (0) target = $region17
    $region16: #{tpu_custom_call.1} parent=1 // pred_region
      %41 = dma.done [#allocation4], 256
    $region17: #{tpu_custom_call.1} parent=1 // pred_fallthru
      _
    %42 = vsyncpa [#allocation3], 1
    %43 = vsyncpa [#allocation4], 1

</llo_original>
